<compile_context>
chip_gen: v6e
topology: v6e:2x2x1
jax: 0.10.0
libtpu: 0.0.40
codegen_flags: <defaults>
</compile_context>

<pallas_src>
import functools

import jax
import jax.numpy as jnp
from jax import lax
from jax.experimental import pallas as pl
from jax.experimental.pallas import tpu as pltpu


def _round_up(x, m):
    return (x + m - 1) // m * m


def _vmem_budget_bytes():
    """~75% of device VMEM (96 MiB on v5e/v6e, 48 MiB on v7x), with fallback."""
    try:
        cap = int(pltpu.get_tpu_info().vmem_capacity_bytes)
    except Exception:  # conservative fallback (works on every generation)
        cap = 64 * 1024 * 1024
    return min(100 * 1024 * 1024, cap * 3 // 4)


def _conv_stats_kernel(p_ref, w_ref, out_ref, stats_ref):
    """One (row-tile, cout-tile) step: im2col matmul + per-tile BN partials.

    p_ref:     (TR, K8)    im2col patch tile (native dtype)
    w_ref:     (K8, TC)    packed conv-weight column tile (native dtype)
    out_ref:   (TR, TC)    conv output tile (input dtype; bias omitted -- cancels in BN)
    stats_ref: (1, 2, TC)  row 0 = per-channel sum, row 1 = sum of squares (f32)
    """
    acc = jnp.dot(p_ref[...], w_ref[...], preferred_element_type=jnp.float32)
    out_ref[...] = acc.astype(out_ref.dtype)
    s = jnp.sum(acc, axis=0, keepdims=True)           # (1, TC)
    ss = jnp.sum(acc * acc, axis=0, keepdims=True)    # (1, TC)
    stats_ref[0] = jnp.concatenate([s, ss], axis=0)   # (2, TC)


def _bn_act_kernel(x_ref, scale_ref, shift_ref, o_ref, *, act):
    """One-pass normalize + affine + activation on a lane-dense tile."""
    y = x_ref[...].astype(jnp.float32) * scale_ref[...] + shift_ref[...]
    if act == "relu":
        y = jnp.maximum(y, 0.0)
    o_ref[...] = y.astype(o_ref.dtype)


def conv_norm_layer(x_nchw, conv_w, conv_b, bn_gamma, bn_beta, *,
                    filter_size, stride, act=None, eps=1e-5, tile_rows=512):
    """Forward pass of ConvNormLayer (train-mode BN). x_nchw: (N, Cin, H, W)."""
    if act is not None and act != "relu":
        raise NotImplementedError(f"activation {act!r} not implemented")
    # Conv bias cancels exactly through the train-mode BN mean subtraction.
    del conv_b

    n, c_in, h, w = x_nchw.shape
    c_out = conv_w.shape[0]
    pad = (filter_size - 1) // 2
    h_out = (h + 2 * pad - filter_size) // stride + 1
    w_out = (w + 2 * pad - filter_size) // stride + 1

    # ---- Glue (XLA, once): NCHW -> NHWC, zero-pad, im2col into (rows, K). ----
    x = jnp.transpose(x_nchw, (0, 2, 3, 1))
    xp = jnp.pad(x, ((0, 0), (pad, pad), (pad, pad), (0, 0)))
    span_h = (h_out - 1) * stride + 1
    span_w = (w_out - 1) * stride + 1
    taps = []
    for kh in range(filter_size):
        for kw in range(filter_size):
            taps.append(xp[:, kh:kh + span_h:stride, kw:kw + span_w:stride, :])
    patches = jnp.concatenate(taps, axis=-1)            # (N, Ho, Wo, KH*KW*Cin)

    rows = n * h_out * w_out
    k_dim = filter_size * filter_size * c_in
    patches = patches.reshape(rows, k_dim)

    # Row tile: <= tile_rows, multiple of 8, and >= 2 tiles whenever rows allow
    # (keeps both v7x TensorCores busy on the "parallel" row axis).
    rows8 = _round_up(rows, 8)
    tr = min(tile_rows, max(8, _round_up((rows8 + 1) // 2, 8)))
    rows_pad = _round_up(rows, tr)
    n_row_tiles = rows_pad // tr

    # Contraction dim: pad only to sublane alignment (x8), not x128 -> no big
    # zero inflation of the patch matrix in HBM.
    k_pad = _round_up(k_dim, 8)

    # Cout: pad to lanes; tile at <=256 so only a weight column (not the full
    # weight) must be resident per step (v7x has only 64 MiB VMEM).
    cout_pad = _round_up(c_out, 128)
    if cout_pad <= 256:
        tc = cout_pad
    elif cout_pad % 256 == 0:
        tc = 256
    else:
        tc = 128
    n_cout_tiles = cout_pad // tc

    patches = jnp.pad(patches, ((0, rows_pad - rows), (0, k_pad - k_dim)))

    # Weight: (Cout, Cin, KH, KW) -> (KH, KW, Cin, Cout) -> (K, Cout), padded.
    # Cast to the input dtype so the MXU sees matching operands (precision
    # deviation from the f32 PyTorch reference only when x is bf16).
    w_mat = jnp.transpose(conv_w, (2, 3, 1, 0)).reshape(k_dim, c_out)
    w_mat = jnp.pad(w_mat.astype(x_nchw.dtype),
                    ((0, k_pad - k_dim), (0, cout_pad - c_out)))

    vmem_budget = _vmem_budget_bytes()

    # ---- Kernel 1: tiled conv matmul + per-tile BN partial statistics. ----
    conv_out, stats = pl.pallas_call(
        _conv_stats_kernel,
        out_shape=(jax.ShapeDtypeStruct((rows_pad, cout_pad), x_nchw.dtype),
                   jax.ShapeDtypeStruct((n_row_tiles, 2, cout_pad), jnp.float32)),
        grid=(n_row_tiles, n_cout_tiles),
        in_specs=[
            pl.BlockSpec((tr, k_pad), lambda i, j: (i, 0)),
            pl.BlockSpec((k_pad, tc), lambda i, j: (0, j)),
        ],
        out_specs=(
            pl.BlockSpec((tr, tc), lambda i, j: (i, j)),
            pl.BlockSpec((1, 2, tc), lambda i, j: (i, 0, j)),
        ),
        compiler_params=pltpu.CompilerParams(
            dimension_semantics=("parallel", "parallel"),
            vmem_limit_bytes=vmem_budget),
    )(patches, w_mat)

    # ---- Tiny global reduction + BN fold (per-channel scalars, XLA). ----
    total = jnp.sum(stats[:, 0, :], axis=0)
    total_sq = jnp.sum(stats[:, 1, :], axis=0)
    mean = total / rows
    var = jnp.maximum(total_sq / rows - mean * mean, 0.0)
    gamma = jnp.pad(bn_gamma.astype(jnp.float32), (0, cout_pad - c_out))
    beta = jnp.pad(bn_beta.astype(jnp.float32), (0, cout_pad - c_out))
    scale = gamma * lax.rsqrt(var + eps)
    shift = beta - mean * scale
    scale = scale.reshape(1, cout_pad)
    shift = shift.reshape(1, cout_pad)

    # ---- Kernel 2: tiled one-pass normalize + affine + activation. ----
    # Output aliases conv_out (same shape & dtype) -> no second HBM buffer.
    out2d = pl.pallas_call(
        functools.partial(_bn_act_kernel, act=act),
        out_shape=jax.ShapeDtypeStruct((rows_pad, cout_pad), x_nchw.dtype),
        grid=(n_row_tiles, n_cout_tiles),
        in_specs=[
            pl.BlockSpec((tr, tc), lambda i, j: (i, j)),
            pl.BlockSpec((1, tc), lambda i, j: (0, j)),
            pl.BlockSpec((1, tc), lambda i, j: (0, j)),
        ],
        out_specs=pl.BlockSpec((tr, tc), lambda i, j: (i, j)),
        input_output_aliases={0: 0},
        compiler_params=pltpu.CompilerParams(
            dimension_semantics=("parallel", "parallel"),
            vmem_limit_bytes=vmem_budget),
    )(conv_out, scale, shift)

    # ---- Back to PyTorch NCHW layout (costs a full extra HBM read+write;
    #      keep the surrounding model NHWC on TPU to avoid it). ----
    out = out2d[:rows, :c_out].reshape(n, h_out, w_out, c_out)
    return jnp.transpose(out, (0, 3, 1, 2))


def _reference(x_nchw, conv_w, conv_b, bn_gamma, bn_beta, *,
               filter_size, stride, act, eps=1e-5):
    """Pure-JAX reference matching PyTorch semantics (NCHW conv + train-mode BN)."""
    pad = (filter_size - 1) // 2
    out = lax.conv_general_dilated(
        x_nchw.astype(jnp.float32), conv_w.astype(jnp.float32),
        window_strides=(stride, stride),
        padding=((pad, pad), (pad, pad)),
        dimension_numbers=("NCHW", "OIHW", "NCHW"))
    out = out + conv_b.reshape(1, -1, 1, 1)
    mean = jnp.mean(out, axis=(0, 2, 3), keepdims=True)
    var = jnp.mean((out - mean) ** 2, axis=(0, 2, 3), keepdims=True)
    out = (out - mean) * lax.rsqrt(var + eps)
    out = out * bn_gamma.reshape(1, -1, 1, 1) + bn_beta.reshape(1, -1, 1, 1)
    if act == "relu":
        out = jnp.maximum(out, 0.0)
    return out


if __name__ == "__main__":
    # Shapes consistent with ConvNormLayer(ch_in=4, ch_out=8, filter_size=3, stride=1, act='relu')
    N, C_IN, H, W = 2, 4, 16, 16
    C_OUT, KSIZE, STRIDE, ACT = 8, 3, 1, "relu"

    key = jax.random.PRNGKey(0)
    kx, kw, kb, kg, kbe = jax.random.split(key, 5)

    x = jax.random.normal(kx, (N, C_IN, H, W), jnp.float32)
    conv_w = 0.1 * jax.random.normal(kw, (C_OUT, C_IN, KSIZE, KSIZE), jnp.float32)
    conv_b = 0.05 * jax.random.normal(kb, (C_OUT,), jnp.float32)
    bn_gamma = 1.0 + 0.1 * jax.random.normal(kg, (C_OUT,), jnp.float32)
    bn_beta = 0.1 * jax.random.normal(kbe, (C_OUT,), jnp.float32)

    fwd = jax.jit(functools.partial(conv_norm_layer,
                                    filter_size=KSIZE, stride=STRIDE, act=ACT))
    out = jax.block_until_ready(fwd(x, conv_w, conv_b, bn_gamma, bn_beta))

    ref = _reference(x, conv_w, conv_b, bn_gamma, bn_beta,
                     filter_size=KSIZE, stride=STRIDE, act=ACT)
    assert out.shape == (N, C_OUT, H, W), out.shape
    max_err = float(jnp.max(jnp.abs(out - ref)))
    assert max_err < 2e-4, max_err

    print("KERNEL_OK")
</pallas_src>

<mosaic_0001>
module attributes {stable_mosaic.version = 11 : i64} {
  func.func @_conv_stats_kernel(%arg0: i32, %arg1: i32, %arg2: memref<256x40xf32, #tpu.memory_space<vmem>>, %arg3: memref<40x128xf32, #tpu.memory_space<vmem>>, %arg4: memref<256x128xf32, #tpu.memory_space<vmem>>, %arg5: memref<1x2x128xf32, #tpu.memory_space<vmem>>) attributes {dimension_semantics = [#tpu.dimension_semantics<parallel>, #tpu.dimension_semantics<parallel>], iteration_bounds = array<i64: 2, 1>, scalar_prefetch = 0 : i64, scratch_operands = 0 : i64, tpu.core_type = #tpu.core_type<tc>, window_params = [{transform_indices = @transform_0, window_bounds = array<i64: 256, 40>}, {transform_indices = @transform_1, window_bounds = array<i64: 40, 128>}, {transform_indices = @transform_2, window_bounds = array<i64: 256, 128>}, {transform_indices = @transform_3, window_bounds = array<i64: 1, 2, 128>}]} {
    %c0 = arith.constant 0 : index
    %c0_0 = arith.constant 0 : index
    %0 = vector.load %arg2[%c0, %c0_0] : memref<256x40xf32, #tpu.memory_space<vmem>>, vector<256x40xf32>
    %c0_1 = arith.constant 0 : index
    %c0_2 = arith.constant 0 : index
    %1 = vector.load %arg3[%c0_1, %c0_2] : memref<40x128xf32, #tpu.memory_space<vmem>>, vector<40x128xf32>
    %cst = arith.constant dense<0.000000e+00> : vector<256x128xf32>
    %2 = tpu.matmul %0, %1, %cst {dimension_numbers = #tpu.dot_dimension_numbers<[1], [0], [0], [1], [0, 0, 1, 1], [], []>} : vector<256x40xf32>, vector<40x128xf32>, vector<256x128xf32> -> vector<256x128xf32>
    %c0_3 = arith.constant 0 : index
    %c0_4 = arith.constant 0 : index
    %3 = vector.load %arg4[%c0_3, %c0_4] : memref<256x128xf32, #tpu.memory_space<vmem>>, vector<256x128xf32>
    tpu.vector_store %arg4[%c0_3, %c0_4], %2 {strides = array<i32>} : memref<256x128xf32, #tpu.memory_space<vmem>>, vector<256x128xf32>,
    %cst_5 = arith.constant dense<0.000000e+00> : vector<128xf32>
    %4 = vector.multi_reduction <add>, %2, %cst_5 [0] : vector<256x128xf32> to vector<128xf32>
    %5 = vector.shape_cast %4 : vector<128xf32> to vector<1x128xf32>
    %6 = arith.mulf %2, %2 : vector<256x128xf32>
    %cst_6 = arith.constant dense<0.000000e+00> : vector<128xf32>
    %7 = vector.multi_reduction <add>, %6, %cst_6 [0] : vector<256x128xf32> to vector<128xf32>
    %8 = vector.shape_cast %7 : vector<128xf32> to vector<1x128xf32>
    %9 = tpu.concatenate %5, %8 in 0 : vector<1x128xf32>, vector<1x128xf32> -> vector<2x128xf32>
    %c0_7 = arith.constant 0 : index
    %c0_8 = arith.constant 0 : index
    %c0_9 = arith.constant 0 : index
    %10 = vector.load %arg5[%c0_7, %c0_8, %c0_9] : memref<1x2x128xf32, #tpu.memory_space<vmem>>, vector<1x2x128xf32>
    %11 = vector.shape_cast %10 : vector<1x2x128xf32> to vector<2x128xf32>
    %12 = vector.shape_cast %9 : vector<2x128xf32> to vector<1x2x128xf32>
    tpu.vector_store %arg5[%c0_7, %c0_8, %c0_9], %12 {strides = array<i32>} : memref<1x2x128xf32, #tpu.memory_space<vmem>>, vector<1x2x128xf32>,
    return
  }
  func.func @transform_0(%arg0: i32, %arg1: i32) -> (i32, i32) {
    %c0_i32 = arith.constant 0 : i32
    %c0_i32_0 = arith.constant 0 : i32
    return %arg0, %c0_i32 : i32, i32
  }
  func.func @transform_1(%arg0: i32, %arg1: i32) -> (i32, i32) {
    %c0_i32 = arith.constant 0 : i32
    %c0_i32_0 = arith.constant 0 : i32
    return %c0_i32, %arg1 : i32, i32
  }
  func.func @transform_2(%arg0: i32, %arg1: i32) -> (i32, i32) {
    %c0_i32 = arith.constant 0 : i32
    return %arg0, %arg1 : i32, i32
  }
  func.func @transform_3(%arg0: i32, %arg1: i32) -> (i32, i32, i32) {
    %c0_i32 = arith.constant 0 : i32
    %c0_i32_0 = arith.constant 0 : i32
    return %arg0, %c0_i32, %arg1 : i32, i32, i32
  }
}

module attributes {stable_mosaic.version = 11 : i64} {
  func.func @_bn_act_kernel(%arg0: i32, %arg1: i32, %arg2: memref<256x128xf32, #tpu.memory_space<vmem>>, %arg3: memref<1x128xf32, #tpu.memory_space<vmem>>, %arg4: memref<1x128xf32, #tpu.memory_space<vmem>>, %arg5: memref<256x128xf32, #tpu.memory_space<vmem>>) attributes {dimension_semantics = [#tpu.dimension_semantics<parallel>, #tpu.dimension_semantics<parallel>], iteration_bounds = array<i64: 2, 1>, scalar_prefetch = 0 : i64, scratch_operands = 0 : i64, tpu.core_type = #tpu.core_type<tc>, window_params = [{transform_indices = @transform_0, window_bounds = array<i64: 256, 128>}, {transform_indices = @transform_1, window_bounds = array<i64: 1, 128>}, {transform_indices = @transform_2, window_bounds = array<i64: 1, 128>}, {transform_indices = @transform_3, window_bounds = array<i64: 256, 128>}]} {
    %c0 = arith.constant 0 : index
    %c0_0 = arith.constant 0 : index
    %0 = vector.load %arg2[%c0, %c0_0] : memref<256x128xf32, #tpu.memory_space<vmem>>, vector<256x128xf32>
    %c0_1 = arith.constant 0 : index
    %c0_2 = arith.constant 0 : index
    %1 = vector.load %arg3[%c0_1, %c0_2] : memref<1x128xf32, #tpu.memory_space<vmem>>, vector<1x128xf32>
    %2 = vector.broadcast %1 : vector<1x128xf32> to vector<256x128xf32>
    %3 = arith.mulf %0, %2 : vector<256x128xf32>
    %c0_3 = arith.constant 0 : index
    %c0_4 = arith.constant 0 : index
    %4 = vector.load %arg4[%c0_3, %c0_4] : memref<1x128xf32, #tpu.memory_space<vmem>>, vector<1x128xf32>
    %5 = vector.broadcast %4 : vector<1x128xf32> to vector<256x128xf32>
    %6 = arith.addf %3, %5 : vector<256x128xf32>
    %cst = arith.constant 0.000000e+00 : f32
    %7 = vector.broadcast %cst : f32 to vector<256x128xf32>
    %8 = arith.maximumf %6, %7 : vector<256x128xf32>
    %c0_5 = arith.constant 0 : index
    %c0_6 = arith.constant 0 : index
    %9 = vector.load %arg5[%c0_5, %c0_6] : memref<256x128xf32, #tpu.memory_space<vmem>>, vector<256x128xf32>
    tpu.vector_store %arg5[%c0_5, %c0_6], %8 {strides = array<i32>} : memref<256x128xf32, #tpu.memory_space<vmem>>, vector<256x128xf32>,
    return
  }
  func.func @transform_0(%arg0: i32, %arg1: i32) -> (i32, i32) {
    %c0_i32 = arith.constant 0 : i32
    return %arg0, %arg1 : i32, i32
  }
  func.func @transform_1(%arg0: i32, %arg1: i32) -> (i32, i32) {
    %c0_i32 = arith.constant 0 : i32
    %c0_i32_0 = arith.constant 0 : i32
    return %c0_i32, %arg1 : i32, i32
  }
  func.func @transform_2(%arg0: i32, %arg1: i32) -> (i32, i32) {
    %c0_i32 = arith.constant 0 : i32
    %c0_i32_0 = arith.constant 0 : i32
    return %c0_i32, %arg1 : i32, i32
  }
  func.func @transform_3(%arg0: i32, %arg1: i32) -> (i32, i32) {
    %c0_i32 = arith.constant 0 : i32
    return %arg0, %arg1 : i32, i32
  }
}

</mosaic_0001>

<llo_original>
// kernel: conv_norm_layer.3
$region0: #{conv_norm_layer.3}
  #allocation0 [shape = 'u32[]', space=smem, size = 0x4, offset = 0x4, fixed_abs, tag = 'smem constant byte address 0x4 - core index']
  #allocation1 [shape = 'u32[144,128]{1,0:T(1,128)}', space=vmem, size = 0x12000, scoped, tag = 'internal scratch']
  %s0 = inlined_call_operand.vmem [shape: f32[512,128], index: 0, kind: input, shape index: {}, may-alias: {0,3}]
  %s1 = inlined_call_operand.vmem [shape: f32[1,128], index: 1, kind: input, shape index: {}]
  %s2 = inlined_call_operand.vmem [shape: f32[1,128], index: 2, kind: input, shape index: {}]
  %s3 = inlined_call_operand.vmem [shape: f32[512,128], index: 3, kind: output, shape index: {}, may-alias: {0,3}]
  %s4 = sld [smem:[#allocation0]]
  $region45: #{conv_norm_layer.3} parent=0
    _
  %s6 = ssub.s32 1, %s4
  %s7 = scalar_select 0, %s6, %s4
  loop: start=0, step=1, limit=4
  $region2: #{conv_norm_layer.3} parent=0 // loop_pre_header
    _
  $region3: #{conv_norm_layer.3} parent=0 // loop_header
    %s9 = sphi 0, %s13
    %p10 = scmp.ge.s32.totalorder %s9, 4
    %s16 = sphi 0, %s28
    %s17 = sphi 0, %s24
    %s18 = sphi 0, %s16
    %s19 = sphi 0, %s17
    %s20 = sphi 0, %s18
    %s21 = sphi 0, %s19
    %s33 = sphi 0, %s35
    %s36 = sphi 0, %s33
    %s37 = sphi 0, %s36
    %s53 = sphi 0, %s37
    %s59 = sphi 0, %s61
    %s62 = sphi 0, %s59
    %s63 = sphi 0, %s62
    %s79 = sphi 0, %s63
    %s85 = sphi 0, %s87
    %s88 = sphi 0, %s85
    %s89 = sphi 0, %s88
    %s105 = sphi 0, %s89
    %s113 = sphi 0, %s115
    %s116 = sphi 0, %s113
    %s117 = sphi 0, %s116
    %s133 = sphi 0, %s117
  $region4: #{conv_norm_layer.3} parent=0 // loop_header_branch
    %12 = sbr.rel (%p10) target = $region8
  $region5: #{conv_norm_layer.3} parent=0 // loop_body
    %s14 = ssub.s32 %s9, 1
    %s15 = ssub.s32 %s9, 2
    %s22 = sadd.s32 1, %s17
    %p23 = scmp.ge.s32.totalorder %s22, 1
    %s24 = scalar_select %p23, 0, %s22
    %s25 = sadd.s32 1, %s16
    %s26 = scalar_select %p23, %s25, %s16
    %p27 = scmp.ge.s32.totalorder %s26, 2
    %s28 = scalar_select %p27, 0, %s26
    %s29 = ssub.s32 %s16, %s28
    %s30 = ssub.s32 %s17, %s24
    %s31 = sor.u32 %s29, %s30
    %p32 = scmp.eq.s32.totalorder %s31, 0
    %s34 = sadd.s32 %s33, 1
    %s35 = scalar_select %p32, %s33, %s34
    %p38 = pneg %p32
    %p39 = scmp.eq.s32.totalorder %s9, 1
    %p40 = por %p38, %p39
    %p41 = scmp.ne.s32.totalorder %s33, %s36
    %p42 = scmp.eq.s32.totalorder %s9, 0
    %p43 = por %p41, %p42
    %p44 = scmp.ne.s32.totalorder %s33, %s36
    %p45 = scmp.eq.s32.totalorder %s14, 1
    %p46 = por %p44, %p45
    %p47 = scmp.ne.s32.totalorder %s36, %s37
    %p48 = scmp.eq.s32.totalorder %s14, 0
    %p49 = por %p47, %p48
    %p50 = scmp.ne.s32.totalorder %s36, %s37
    %p51 = scmp.eq.s32.totalorder %s15, 1
    %p52 = por %p50, %p51
    %p54 = scmp.ne.s32.totalorder %s37, %s53
    %p55 = scmp.eq.s32.totalorder %s15, 0
    %p56 = por %p54, %p55
    %s57 = ssub.s32 %s17, %s24
    %p58 = scmp.eq.s32.totalorder %s57, 0
    %s60 = sadd.s32 %s59, 1
    %s61 = scalar_select %p58, %s59, %s60
    %p64 = pneg %p58
    %p65 = scmp.eq.s32.totalorder %s9, 1
    %p66 = por %p64, %p65
    %p67 = scmp.ne.s32.totalorder %s59, %s62
    %p68 = scmp.eq.s32.totalorder %s9, 0
    %p69 = por %p67, %p68
    %p70 = scmp.ne.s32.totalorder %s59, %s62
    %p71 = scmp.eq.s32.totalorder %s14, 1
    %p72 = por %p70, %p71
    %p73 = scmp.ne.s32.totalorder %s62, %s63
    %p74 = scmp.eq.s32.totalorder %s14, 0
    %p75 = por %p73, %p74
    %p76 = scmp.ne.s32.totalorder %s62, %s63
    %p77 = scmp.eq.s32.totalorder %s15, 1
    %p78 = por %p76, %p77
    %p80 = scmp.ne.s32.totalorder %s63, %s79
    %p81 = scmp.eq.s32.totalorder %s15, 0
    %p82 = por %p80, %p81
    %s83 = ssub.s32 %s17, %s24
    %p84 = scmp.eq.s32.totalorder %s83, 0
    %s86 = sadd.s32 %s85, 1
    %s87 = scalar_select %p84, %s85, %s86
    %p90 = pneg %p84
    %p91 = scmp.eq.s32.totalorder %s9, 1
    %p92 = por %p90, %p91
    %p93 = scmp.ne.s32.totalorder %s85, %s88
    %p94 = scmp.eq.s32.totalorder %s9, 0
    %p95 = por %p93, %p94
    %p96 = scmp.ne.s32.totalorder %s85, %s88
    %p97 = scmp.eq.s32.totalorder %s14, 1
    %p98 = por %p96, %p97
    %p99 = scmp.ne.s32.totalorder %s88, %s89
    %p100 = scmp.eq.s32.totalorder %s14, 0
    %p101 = por %p99, %p100
    %p102 = scmp.ne.s32.totalorder %s88, %s89
    %p103 = scmp.eq.s32.totalorder %s15, 1
    %p104 = por %p102, %p103
    %p106 = scmp.ne.s32.totalorder %s89, %s105
    %p107 = scmp.eq.s32.totalorder %s15, 0
    %p108 = por %p106, %p107
    %s109 = ssub.s32 %s16, %s28
    %s110 = ssub.s32 %s17, %s24
    %s111 = sor.u32 %s109, %s110
    %p112 = scmp.eq.s32.totalorder %s111, 0
    %s114 = sadd.s32 %s113, 1
    %s115 = scalar_select %p112, %s113, %s114
    %p118 = pneg %p112
    %p119 = scmp.eq.s32.totalorder %s9, 1
    %p120 = por %p118, %p119
    %p121 = scmp.ne.s32.totalorder %s113, %s116
    %p122 = scmp.eq.s32.totalorder %s9, 0
    %p123 = por %p121, %p122
    %p124 = scmp.ne.s32.totalorder %s113, %s116
    %p125 = scmp.eq.s32.totalorder %s14, 1
    %p126 = por %p124, %p125
    %p127 = scmp.ne.s32.totalorder %s116, %s117
    %p128 = scmp.eq.s32.totalorder %s14, 0
    %p129 = por %p127, %p128
    %p130 = scmp.ne.s32.totalorder %s116, %s117
    %p131 = scmp.eq.s32.totalorder %s15, 1
    %p132 = por %p130, %p131
    %p134 = scmp.ne.s32.totalorder %s117, %s133
    %p135 = scmp.eq.s32.totalorder %s15, 0
    %p136 = por %p134, %p135
    %p137 = scmp.le.s32.totalorder 1, %s9
    %p138 = scmp.lt.s32.totalorder %s9, 3
    %p139 = pnand %p137, %p138
    %p140 = pneg %p139
    // Predicated region
    $region9: #{conv_norm_layer.3} parent=5 // pred_check
      _
    $region10: #{conv_norm_layer.3} parent=5 // pred_check_branch
      %142 = sbr.rel (%p139) target = $region12
    $region11: #{conv_norm_layer.3} parent=5 // pred_region
      %s143 = ssub.s32 %s9, 1
      // Predicated region
      $region13: #{conv_norm_layer.3} parent=11 // pred_check
        %p144 = pneg %p75
      $region14: #{conv_norm_layer.3} parent=11 // pred_check_branch
        %146 = sbr.rel (%p144) target = $region16
      $region15: #{conv_norm_layer.3} parent=11 // pred_region
        %p147 = scmp.lt.s32.totalorder %s19, 0
        %s148 = scalar_select %p147, %s19, 0
        %s149 = scalar_lea.vmem %s1, %s148
      $region16: #{conv_norm_layer.3} parent=11 // pred_fallthru
        _
      // Predicated region
      $region17: #{conv_norm_layer.3} parent=11 // pred_check
        %p150 = pneg %p101
      $region18: #{conv_norm_layer.3} parent=11 // pred_check_branch
        %152 = sbr.rel (%p150) target = $region20
      $region19: #{conv_norm_layer.3} parent=11 // pred_region
        %p153 = scmp.lt.s32.totalorder %s19, 0
        %s154 = scalar_select %p153, %s19, 0
        %s155 = scalar_lea.vmem %s2, %s154
      $region20: #{conv_norm_layer.3} parent=11 // pred_fallthru
        _
    $region12: #{conv_norm_layer.3} parent=5 // pred_fallthru
      _
    %p156 = scmp.lt.s32.totalorder %s9, 2
    // Predicated region
    $region21: #{conv_norm_layer.3} parent=5 // pred_check
      %p157 = pneg %p156
    $region22: #{conv_norm_layer.3} parent=5 // pred_check_branch
      %159 = sbr.rel (%p157) target = $region24
    $region23: #{conv_norm_layer.3} parent=5 // pred_region
      // Predicated region
      $region25: #{conv_norm_layer.3} parent=23 // pred_check
        %p160 = pneg %p43
      $region26: #{conv_norm_layer.3} parent=23 // pred_check_branch
        %162 = sbr.rel (%p160) target = $region28
      $region27: #{conv_norm_layer.3} parent=23 // pred_region
        %s163 = smul.u32 32, %s16
        %p164 = scmp.lt.s32.totalorder %s163, 63
        %s165 = scalar_select %p164, %s163, 63
        %p166 = scmp.lt.s32.totalorder %s17, 0
        %s167 = scalar_select %p166, %s17, 0
        %s168 = sadd.s32 %s167, %s165
        %s169 = smul.addr %s168, 8
        %s170 = scalar_lea.vmem %s0, %s169
        %s171 = smul.u32 32, %s16
      $region28: #{conv_norm_layer.3} parent=23 // pred_fallthru
        _
    $region24: #{conv_norm_layer.3} parent=5 // pred_fallthru
      _
    %p172 = scmp.le.s32.totalorder 1, %s9
    %p173 = scmp.lt.s32.totalorder %s9, 3
    %p174 = pnand %p172, %p173
    %p175 = pneg %p174
    // Predicated region
    $region29: #{conv_norm_layer.3} parent=5 // pred_check
      _
    $region30: #{conv_norm_layer.3} parent=5 // pred_check_branch
      %177 = sbr.rel (%p174) target = $region32
    $region31: #{conv_norm_layer.3} parent=5 // pred_region
      %s178 = ssub.s32 %s9, 1
      %s179 = smul.u32 32, %s18
      %p180 = scmp.lt.s32.totalorder %s179, 63
      %s181 = scalar_select %p180, %s179, 63
      %p182 = scmp.lt.s32.totalorder %s19, 0
      %s183 = scalar_select %p182, %s19, 0
      %s184 = sadd.s32 %s183, %s181
      %s185 = smul.addr %s184, 8
      %s186 = scalar_lea.vmem %s0, %s185
      %p187 = pneg %p49
      %p188 = pneg %p46
      %p189 = scmp.lt.s32.totalorder %s19, 0
      %s190 = scalar_select %p189, %s19, 0
      %s191 = scalar_lea.vmem %s1, %s190
      %p192 = pneg %p75
      %p193 = pneg %p72
      %p194 = scmp.lt.s32.totalorder %s19, 0
      %s195 = scalar_select %p194, %s19, 0
      %s196 = scalar_lea.vmem %s2, %s195
      %p197 = pneg %p101
      %p198 = pneg %p98
      %p199 = pneg %p129
      %p200 = pneg %p126
      %s201 = smul.u32 32, %s18
      %p202 = scmp.lt.s32.totalorder %s201, 63
      %s203 = scalar_select %p202, %s201, 63
      %p204 = scmp.lt.s32.totalorder %s19, 0
      %s205 = scalar_select %p204, %s19, 0
      %s206 = sadd.s32 %s205, %s203
      %s207 = smul.addr %s206, 8
      %s208 = scalar_lea.vmem %s3, %s207
      %s209 = smul.u32 32, %s18
      %p210 = scmp.lt.s32.totalorder %s209, 63
      %s211 = scalar_select %p210, %s209, 63
      %p212 = scmp.lt.s32.totalorder %s19, 0
      %s213 = scalar_select %p212, %s19, 0
      %s214 = sadd.s32 %s213, %s211
      %s215 = smul.addr %s214, 8
      %s216 = scalar_lea.vmem %s0, %s215
      %s217 = smul.u32 32, %s18
      %p218 = scmp.lt.s32.totalorder %s19, 0
      %s219 = scalar_select %p218, %s19, 0
      %s220 = scalar_lea.vmem %s1, %s219
      %p221 = scmp.lt.s32.totalorder %s19, 0
      %s222 = scalar_select %p221, %s19, 0
      %s223 = scalar_lea.vmem %s2, %s222
      %s224 = smul.u32 32, %s18
      %p225 = scmp.lt.s32.totalorder %s224, 63
      %s226 = scalar_select %p225, %s224, 63
      %p227 = scmp.lt.s32.totalorder %s19, 0
      %s228 = scalar_select %p227, %s19, 0
      %s229 = sadd.s32 %s228, %s226
      %s230 = smul.addr %s229, 8
      %s231 = scalar_lea.vmem %s3, %s230
      %s232 = smul.u32 32, %s18
      %v233 = vld [vmem:[%s216] sm:$0xff]
      %v234 = vld [vmem:[%s216 + $0x8] sm:$0xff]
      %v235 = vld [vmem:[%s216 + $0x10] sm:$0xff]
      %v236 = vld [vmem:[%s216 + $0x18] sm:$0xff]
      %v237 = vld [vmem:[%s216 + $0x20] sm:$0xff]
      %v238 = vld [vmem:[%s216 + $0x28] sm:$0xff]
      %v239 = vld [vmem:[%s216 + $0x30] sm:$0xff]
      %v240 = vld [vmem:[%s216 + $0x38] sm:$0xff]
      %v241 = vld [vmem:[%s216 + $0x40] sm:$0xff]
      %v242 = vld [vmem:[%s216 + $0x48] sm:$0xff]
      %v243 = vld [vmem:[%s216 + $0x50] sm:$0xff]
      %v244 = vld [vmem:[%s216 + $0x58] sm:$0xff]
      %v245 = vld [vmem:[%s216 + $0x60] sm:$0xff]
      %v246 = vld [vmem:[%s216 + $0x68] sm:$0xff]
      %v247 = vld [vmem:[%s216 + $0x70] sm:$0xff]
      %v248 = vld [vmem:[%s216 + $0x78] sm:$0xff]
      %v249 = vld [vmem:[%s216 + $0x80] sm:$0xff]
      %v250 = vld [vmem:[%s216 + $0x88] sm:$0xff]
      %v251 = vld [vmem:[%s216 + $0x90] sm:$0xff]
      %v252 = vld [vmem:[%s216 + $0x98] sm:$0xff]
      %v253 = vld [vmem:[%s216 + $0xa0] sm:$0xff]
      %v254 = vld [vmem:[%s216 + $0xa8] sm:$0xff]
      %v255 = vld [vmem:[%s216 + $0xb0] sm:$0xff]
      %v256 = vld [vmem:[%s216 + $0xb8] sm:$0xff]
      %v257 = vld [vmem:[%s216 + $0xc0] sm:$0xff]
      %v258 = vld [vmem:[%s216 + $0xc8] sm:$0xff]
      %v259 = vld [vmem:[%s216 + $0xd0] sm:$0xff]
      %v260 = vld [vmem:[%s216 + $0xd8] sm:$0xff]
      %v261 = vld [vmem:[%s216 + $0xe0] sm:$0xff]
      %v262 = vld [vmem:[%s216 + $0xe8] sm:$0xff]
      %v263 = vld [vmem:[%s216 + $0xf0] sm:$0xff]
      %v264 = vld [vmem:[%s216 + $0xf8] sm:$0xff]
      %v265 = vld [vmem:[%s220] sm:$0x1]
      %v267 = vlaneseq
      %v268 = vshrl.u32 %v267, 7
      %v269 = vsub.s32 0, %v268
      %v270 = vrot.slane %v265, %v269
      %v272 = vmul.f32 %v233, %v270
      %v273 = vmul.f32 %v234, %v270
      %v274 = vmul.f32 %v235, %v270
      %v275 = vmul.f32 %v236, %v270
      %v276 = vmul.f32 %v237, %v270
      %v277 = vmul.f32 %v238, %v270
      %v278 = vmul.f32 %v239, %v270
      %v279 = vmul.f32 %v240, %v270
      %v280 = vmul.f32 %v241, %v270
      %v281 = vmul.f32 %v242, %v270
      %v282 = vmul.f32 %v243, %v270
      %v283 = vmul.f32 %v244, %v270
      %v284 = vmul.f32 %v245, %v270
      %v285 = vmul.f32 %v246, %v270
      %v286 = vmul.f32 %v247, %v270
      %v287 = vmul.f32 %v248, %v270
      %v288 = vmul.f32 %v249, %v270
      %v289 = vmul.f32 %v250, %v270
      %v290 = vmul.f32 %v251, %v270
      %v291 = vmul.f32 %v252, %v270
      %v292 = vmul.f32 %v253, %v270
      %v293 = vmul.f32 %v254, %v270
      %v294 = vmul.f32 %v255, %v270
      %v295 = vmul.f32 %v256, %v270
      %v296 = vmul.f32 %v257, %v270
      %v297 = vmul.f32 %v258, %v270
      %v298 = vmul.f32 %v259, %v270
      %v299 = vmul.f32 %v260, %v270
      %v300 = vmul.f32 %v261, %v270
      %v301 = vmul.f32 %v262, %v270
      %v302 = vmul.f32 %v263, %v270
      %v303 = vmul.f32 %v264, %v270
      %v304 = vld [vmem:[%s223] sm:$0x1]
      %v306 = vlaneseq
      %v307 = vshrl.u32 %v306, 7
      %v308 = vsub.s32 0, %v307
      %v309 = vrot.slane %v304, %v308
      %v311 = vadd.f32 %v272, %v309
      %v312 = vadd.f32 %v273, %v309
      %v313 = vadd.f32 %v274, %v309
      %v314 = vadd.f32 %v275, %v309
      %v315 = vadd.f32 %v276, %v309
      %v316 = vadd.f32 %v277, %v309
      %v317 = vadd.f32 %v278, %v309
      %v318 = vadd.f32 %v279, %v309
      %v319 = vadd.f32 %v280, %v309
      %v320 = vadd.f32 %v281, %v309
      %v321 = vadd.f32 %v282, %v309
      %v322 = vadd.f32 %v283, %v309
      %v323 = vadd.f32 %v284, %v309
      %v324 = vadd.f32 %v285, %v309
      %v325 = vadd.f32 %v286, %v309
      %v326 = vadd.f32 %v287, %v309
      %v327 = vadd.f32 %v288, %v309
      %v328 = vadd.f32 %v289, %v309
      %v329 = vadd.f32 %v290, %v309
      %v330 = vadd.f32 %v291, %v309
      %v331 = vadd.f32 %v292, %v309
      %v332 = vadd.f32 %v293, %v309
      %v333 = vadd.f32 %v294, %v309
      %v334 = vadd.f32 %v295, %v309
      %v335 = vadd.f32 %v296, %v309
      %v336 = vadd.f32 %v297, %v309
      %v337 = vadd.f32 %v298, %v309
      %v338 = vadd.f32 %v299, %v309
      %v339 = vadd.f32 %v300, %v309
      %v340 = vadd.f32 %v301, %v309
      %v341 = vadd.f32 %v302, %v309
      %v342 = vadd.f32 %v303, %v309
      %v343 = vmax.f32 %v311, 0.0
      %v344 = vmax.f32 %v312, 0.0
      %v345 = vmax.f32 %v313, 0.0
      %v346 = vmax.f32 %v314, 0.0
      %v347 = vmax.f32 %v315, 0.0
      %v348 = vmax.f32 %v316, 0.0
      %v349 = vmax.f32 %v317, 0.0
      %v350 = vmax.f32 %v318, 0.0
      %v351 = vmax.f32 %v319, 0.0
      %v352 = vmax.f32 %v320, 0.0
      %v353 = vmax.f32 %v321, 0.0
      %v354 = vmax.f32 %v322, 0.0
      %v355 = vmax.f32 %v323, 0.0
      %v356 = vmax.f32 %v324, 0.0
      %v357 = vmax.f32 %v325, 0.0
      %v358 = vmax.f32 %v326, 0.0
      %v359 = vmax.f32 %v327, 0.0
      %v360 = vmax.f32 %v328, 0.0
      %v361 = vmax.f32 %v329, 0.0
      %v362 = vmax.f32 %v330, 0.0
      %v363 = vmax.f32 %v331, 0.0
      %v364 = vmax.f32 %v332, 0.0
      %v365 = vmax.f32 %v333, 0.0
      %v366 = vmax.f32 %v334, 0.0
      %v367 = vmax.f32 %v335, 0.0
      %v368 = vmax.f32 %v336, 0.0
      %v369 = vmax.f32 %v337, 0.0
      %v370 = vmax.f32 %v338, 0.0
      %v371 = vmax.f32 %v339, 0.0
      %v372 = vmax.f32 %v340, 0.0
      %v373 = vmax.f32 %v341, 0.0
      %v374 = vmax.f32 %v342, 0.0
      %375 = vst [vmem:[%s231] sm:$0xff] %v343
      %376 = vst [vmem:[%s231 + $0x8] sm:$0xff] %v344
      %377 = vst [vmem:[%s231 + $0x10] sm:$0xff] %v345
      %378 = vst [vmem:[%s231 + $0x18] sm:$0xff] %v346
      %379 = vst [vmem:[%s231 + $0x20] sm:$0xff] %v347
      %380 = vst [vmem:[%s231 + $0x28] sm:$0xff] %v348
      %381 = vst [vmem:[%s231 + $0x30] sm:$0xff] %v349
      %382 = vst [vmem:[%s231 + $0x38] sm:$0xff] %v350
      %383 = vst [vmem:[%s231 + $0x40] sm:$0xff] %v351
      %384 = vst [vmem:[%s231 + $0x48] sm:$0xff] %v352
      %385 = vst [vmem:[%s231 + $0x50] sm:$0xff] %v353
      %386 = vst [vmem:[%s231 + $0x58] sm:$0xff] %v354
      %387 = vst [vmem:[%s231 + $0x60] sm:$0xff] %v355
      %388 = vst [vmem:[%s231 + $0x68] sm:$0xff] %v356
      %389 = vst [vmem:[%s231 + $0x70] sm:$0xff] %v357
      %390 = vst [vmem:[%s231 + $0x78] sm:$0xff] %v358
      %391 = vst [vmem:[%s231 + $0x80] sm:$0xff] %v359
      %392 = vst [vmem:[%s231 + $0x88] sm:$0xff] %v360
      %393 = vst [vmem:[%s231 + $0x90] sm:$0xff] %v361
      %394 = vst [vmem:[%s231 + $0x98] sm:$0xff] %v362
      %395 = vst [vmem:[%s231 + $0xa0] sm:$0xff] %v363
      %396 = vst [vmem:[%s231 + $0xa8] sm:$0xff] %v364
      %397 = vst [vmem:[%s231 + $0xb0] sm:$0xff] %v365
      %398 = vst [vmem:[%s231 + $0xb8] sm:$0xff] %v366
      %399 = vst [vmem:[%s231 + $0xc0] sm:$0xff] %v367
      %400 = vst [vmem:[%s231 + $0xc8] sm:$0xff] %v368
      %401 = vst [vmem:[%s231 + $0xd0] sm:$0xff] %v369
      %402 = vst [vmem:[%s231 + $0xd8] sm:$0xff] %v370
      %403 = vst [vmem:[%s231 + $0xe0] sm:$0xff] %v371
      %404 = vst [vmem:[%s231 + $0xe8] sm:$0xff] %v372
      %405 = vst [vmem:[%s231 + $0xf0] sm:$0xff] %v373
      %406 = vst [vmem:[%s231 + $0xf8] sm:$0xff] %v374
      %s407 = smul.u32 32, %s18
      %p408 = scmp.lt.s32.totalorder %s407, 63
      %s409 = scalar_select %p408, %s407, 63
      %p410 = scmp.lt.s32.totalorder %s19, 0
      %s411 = scalar_select %p410, %s19, 0
      %s412 = sadd.s32 %s411, %s409
      %s413 = smul.addr %s412, 8
      %s414 = scalar_lea.vmem %s3, %s413
      // Predicated region
      $region33: #{conv_norm_layer.3} parent=31 // pred_check
        %p415 = pneg %p126
      $region34: #{conv_norm_layer.3} parent=31 // pred_check_branch
        %417 = sbr.rel (%p415) target = $region36
      $region35: #{conv_norm_layer.3} parent=31 // pred_region
        %s418 = smul.u32 32, %s18
      $region36: #{conv_norm_layer.3} parent=31 // pred_fallthru
        _
    $region32: #{conv_norm_layer.3} parent=5 // pred_fallthru
      _
    %p419 = scmp.le.s32.totalorder 2, %s9
    // Predicated region
    $region37: #{conv_norm_layer.3} parent=5 // pred_check
      %p420 = pneg %p419
    $region38: #{conv_norm_layer.3} parent=5 // pred_check_branch
      %422 = sbr.rel (%p420) target = $region40
    $region39: #{conv_norm_layer.3} parent=5 // pred_region
      %s423 = ssub.s32 %s9, 2
      // Predicated region
      $region41: #{conv_norm_layer.3} parent=39 // pred_check
        %p424 = pneg %p132
      $region42: #{conv_norm_layer.3} parent=39 // pred_check_branch
        %426 = sbr.rel (%p424) target = $region44
      $region43: #{conv_norm_layer.3} parent=39 // pred_region
        %s427 = smul.u32 32, %s20
        %p428 = scmp.lt.s32.totalorder %s427, 63
        %s429 = scalar_select %p428, %s427, 63
        %p430 = scmp.lt.s32.totalorder %s21, 0
        %s431 = scalar_select %p430, %s21, 0
        %s432 = sadd.s32 %s431, %s429
        %s433 = smul.addr %s432, 8
        %s434 = scalar_lea.vmem %s3, %s433
      $region44: #{conv_norm_layer.3} parent=39 // pred_fallthru
        _
    $region40: #{conv_norm_layer.3} parent=5 // pred_fallthru
      _
  $region6: #{conv_norm_layer.3} parent=0 // loop_footer
    %s13 = sadd.s32 1, %s9
  $region7: #{conv_norm_layer.3} parent=0 // loop_footer_branch
    %8 = sbr.rel target = $region3
  $region8: #{conv_norm_layer.3} parent=0 // loop_exit
    _

// kernel: conv_norm_layer.2
$region0: #{conv_norm_layer.2}
  #allocation0 [shape = 'u32[]', space=smem, size = 0x4, offset = 0x4, fixed_abs, tag = 'smem constant byte address 0x4 - core index']
  #allocation1 [shape = 'u32[144,128]{1,0:T(1,128)}', space=vmem, size = 0x12000, scoped, tag = 'internal scratch']
  %s0 = inlined_call_operand.vmem [shape: f32[512,40], index: 0, kind: input, shape index: {}]
  %s1 = inlined_call_operand.vmem [shape: f32[40,128], index: 1, kind: input, shape index: {}]
  %s2 = inlined_call_operand.vmem [shape: f32[512,128], index: 2, kind: output, shape index: {0}]
  %s3 = inlined_call_operand.vmem [shape: f32[2,2,128], index: 3, kind: output, shape index: {1}]
  %4 = xla_tuple %s2, %s3
  %s5 = sld [smem:[#allocation0]]
  $region49: #{conv_norm_layer.2} parent=0
    _
  %s7 = ssub.s32 1, %s5
  %s8 = scalar_select 0, %s7, %s5
  loop: start=0, step=1, limit=4
  $region2: #{conv_norm_layer.2} parent=0 // loop_pre_header
    _
  $region3: #{conv_norm_layer.2} parent=0 // loop_header
    %s10 = sphi 0, %s14
    %p11 = scmp.ge.s32.totalorder %s10, 4
    %s17 = sphi 0, %s29
    %s18 = sphi 0, %s25
    %s19 = sphi 0, %s17
    %s20 = sphi 0, %s18
    %s21 = sphi 0, %s19
    %s22 = sphi 0, %s20
    %s32 = sphi 0, %s34
    %s35 = sphi 0, %s32
    %s36 = sphi 0, %s35
    %s52 = sphi 0, %s36
    %s58 = sphi 0, %s60
    %s61 = sphi 0, %s58
    %s62 = sphi 0, %s61
    %s78 = sphi 0, %s62
    %s86 = sphi 0, %s88
    %s89 = sphi 0, %s86
    %s90 = sphi 0, %s89
    %s106 = sphi 0, %s90
    %s114 = sphi 0, %s116
    %s117 = sphi 0, %s114
    %s118 = sphi 0, %s117
    %s134 = sphi 0, %s118
  $region4: #{conv_norm_layer.2} parent=0 // loop_header_branch
    %13 = sbr.rel (%p11) target = $region8
  $region5: #{conv_norm_layer.2} parent=0 // loop_body
    %s15 = ssub.s32 %s10, 1
    %s16 = ssub.s32 %s10, 2
    %s23 = sadd.s32 1, %s18
    %p24 = scmp.ge.s32.totalorder %s23, 1
    %s25 = scalar_select %p24, 0, %s23
    %s26 = sadd.s32 1, %s17
    %s27 = scalar_select %p24, %s26, %s17
    %p28 = scmp.ge.s32.totalorder %s27, 2
    %s29 = scalar_select %p28, 0, %s27
    %s30 = ssub.s32 %s17, %s29
    %p31 = scmp.eq.s32.totalorder %s30, 0
    %s33 = sadd.s32 %s32, 1
    %s34 = scalar_select %p31, %s32, %s33
    %p37 = pneg %p31
    %p38 = scmp.eq.s32.totalorder %s10, 1
    %p39 = por %p37, %p38
    %p40 = scmp.ne.s32.totalorder %s32, %s35
    %p41 = scmp.eq.s32.totalorder %s10, 0
    %p42 = por %p40, %p41
    %p43 = scmp.ne.s32.totalorder %s32, %s35
    %p44 = scmp.eq.s32.totalorder %s15, 1
    %p45 = por %p43, %p44
    %p46 = scmp.ne.s32.totalorder %s35, %s36
    %p47 = scmp.eq.s32.totalorder %s15, 0
    %p48 = por %p46, %p47
    %p49 = scmp.ne.s32.totalorder %s35, %s36
    %p50 = scmp.eq.s32.totalorder %s16, 1
    %p51 = por %p49, %p50
    %p53 = scmp.ne.s32.totalorder %s36, %s52
    %p54 = scmp.eq.s32.totalorder %s16, 0
    %p55 = por %p53, %p54
    %s56 = ssub.s32 %s18, %s25
    %p57 = scmp.eq.s32.totalorder %s56, 0
    %s59 = sadd.s32 %s58, 1
    %s60 = scalar_select %p57, %s58, %s59
    %p63 = pneg %p57
    %p64 = scmp.eq.s32.totalorder %s10, 1
    %p65 = por %p63, %p64
    %p66 = scmp.ne.s32.totalorder %s58, %s61
    %p67 = scmp.eq.s32.totalorder %s10, 0
    %p68 = por %p66, %p67
    %p69 = scmp.ne.s32.totalorder %s58, %s61
    %p70 = scmp.eq.s32.totalorder %s15, 1
    %p71 = por %p69, %p70
    %p72 = scmp.ne.s32.totalorder %s61, %s62
    %p73 = scmp.eq.s32.totalorder %s15, 0
    %p74 = por %p72, %p73
    %p75 = scmp.ne.s32.totalorder %s61, %s62
    %p76 = scmp.eq.s32.totalorder %s16, 1
    %p77 = por %p75, %p76
    %p79 = scmp.ne.s32.totalorder %s62, %s78
    %p80 = scmp.eq.s32.totalorder %s16, 0
    %p81 = por %p79, %p80
    %s82 = ssub.s32 %s17, %s29
    %s83 = ssub.s32 %s18, %s25
    %s84 = sor.u32 %s82, %s83
    %p85 = scmp.eq.s32.totalorder %s84, 0
    %s87 = sadd.s32 %s86, 1
    %s88 = scalar_select %p85, %s86, %s87
    %p91 = pneg %p85
    %p92 = scmp.eq.s32.totalorder %s10, 1
    %p93 = por %p91, %p92
    %p94 = scmp.ne.s32.totalorder %s86, %s89
    %p95 = scmp.eq.s32.totalorder %s10, 0
    %p96 = por %p94, %p95
    %p97 = scmp.ne.s32.totalorder %s86, %s89
    %p98 = scmp.eq.s32.totalorder %s15, 1
    %p99 = por %p97, %p98
    %p100 = scmp.ne.s32.totalorder %s89, %s90
    %p101 = scmp.eq.s32.totalorder %s15, 0
    %p102 = por %p100, %p101
    %p103 = scmp.ne.s32.totalorder %s89, %s90
    %p104 = scmp.eq.s32.totalorder %s16, 1
    %p105 = por %p103, %p104
    %p107 = scmp.ne.s32.totalorder %s90, %s106
    %p108 = scmp.eq.s32.totalorder %s16, 0
    %p109 = por %p107, %p108
    %s110 = ssub.s32 %s17, %s29
    %s111 = ssub.s32 %s18, %s25
    %s112 = sor.u32 %s110, %s111
    %p113 = scmp.eq.s32.totalorder %s112, 0
    %s115 = sadd.s32 %s114, 1
    %s116 = scalar_select %p113, %s114, %s115
    %p119 = pneg %p113
    %p120 = scmp.eq.s32.totalorder %s10, 1
    %p121 = por %p119, %p120
    %p122 = scmp.ne.s32.totalorder %s114, %s117
    %p123 = scmp.eq.s32.totalorder %s10, 0
    %p124 = por %p122, %p123
    %p125 = scmp.ne.s32.totalorder %s114, %s117
    %p126 = scmp.eq.s32.totalorder %s15, 1
    %p127 = por %p125, %p126
    %p128 = scmp.ne.s32.totalorder %s117, %s118
    %p129 = scmp.eq.s32.totalorder %s15, 0
    %p130 = por %p128, %p129
    %p131 = scmp.ne.s32.totalorder %s117, %s118
    %p132 = scmp.eq.s32.totalorder %s16, 1
    %p133 = por %p131, %p132
    %p135 = scmp.ne.s32.totalorder %s118, %s134
    %p136 = scmp.eq.s32.totalorder %s16, 0
    %p137 = por %p135, %p136
    %p138 = scmp.le.s32.totalorder 1, %s10
    %p139 = scmp.lt.s32.totalorder %s10, 3
    %p140 = pnand %p138, %p139
    %p141 = pneg %p140
    // Predicated region
    $region9: #{conv_norm_layer.2} parent=5 // pred_check
      _
    $region10: #{conv_norm_layer.2} parent=5 // pred_check_branch
      %143 = sbr.rel (%p140) target = $region12
    $region11: #{conv_norm_layer.2} parent=5 // pred_region
      %s144 = ssub.s32 %s10, 1
      // Predicated region
      $region13: #{conv_norm_layer.2} parent=11 // pred_check
        %p145 = pneg %p74
      $region14: #{conv_norm_layer.2} parent=11 // pred_check_branch
        %147 = sbr.rel (%p145) target = $region16
      $region15: #{conv_norm_layer.2} parent=11 // pred_region
        %p148 = scmp.lt.s32.totalorder %s20, 0
        %s149 = scalar_select %p148, %s20, 0
        %s150 = smul.addr %s149, 8
        %s151 = scalar_lea.vmem %s1, %s150
      $region16: #{conv_norm_layer.2} parent=11 // pred_fallthru
        _
    $region12: #{conv_norm_layer.2} parent=5 // pred_fallthru
      _
    %p152 = scmp.lt.s32.totalorder %s10, 2
    // Predicated region
    $region17: #{conv_norm_layer.2} parent=5 // pred_check
      %p153 = pneg %p152
    $region18: #{conv_norm_layer.2} parent=5 // pred_check_branch
      %155 = sbr.rel (%p153) target = $region20
    $region19: #{conv_norm_layer.2} parent=5 // pred_region
      // Predicated region
      $region21: #{conv_norm_layer.2} parent=19 // pred_check
        %p156 = pneg %p42
      $region22: #{conv_norm_layer.2} parent=19 // pred_check_branch
        %158 = sbr.rel (%p156) target = $region24
      $region23: #{conv_norm_layer.2} parent=19 // pred_region
        %s159 = smul.u32 32, %s17
        %p160 = scmp.lt.s32.totalorder %s159, 63
        %s161 = scalar_select %p160, %s159, 63
        %s162 = smul.addr %s161, 8
        %s163 = scalar_lea.vmem %s0, %s162
        %s164 = smul.u32 32, %s17
      $region24: #{conv_norm_layer.2} parent=19 // pred_fallthru
        _
    $region20: #{conv_norm_layer.2} parent=5 // pred_fallthru
      _
    %p165 = scmp.le.s32.totalorder 1, %s10
    %p166 = scmp.lt.s32.totalorder %s10, 3
    %p167 = pnand %p165, %p166
    %p168 = pneg %p167
    // Predicated region
    $region25: #{conv_norm_layer.2} parent=5 // pred_check
      _
    $region26: #{conv_norm_layer.2} parent=5 // pred_check_branch
      %170 = sbr.rel (%p167) target = $region28
    $region27: #{conv_norm_layer.2} parent=5 // pred_region
      %s171 = ssub.s32 %s10, 1
      %s172 = smul.u32 32, %s19
      %p173 = scmp.lt.s32.totalorder %s172, 63
      %s174 = scalar_select %p173, %s172, 63
      %s175 = smul.addr %s174, 8
      %s176 = scalar_lea.vmem %s0, %s175
      %p177 = pneg %p48
      %p178 = pneg %p45
      %p179 = scmp.lt.s32.totalorder %s20, 0
      %s180 = scalar_select %p179, %s20, 0
      %s181 = smul.addr %s180, 8
      %s182 = scalar_lea.vmem %s1, %s181
      %p183 = pneg %p74
      %p184 = pneg %p71
      %p185 = pneg %p102
      %p186 = pneg %p99
      %s187 = smul.u32 32, %s19
      %p188 = scmp.lt.s32.totalorder %s187, 63
      %s189 = scalar_select %p188, %s187, 63
      %p190 = scmp.lt.s32.totalorder %s20, 0
      %s191 = scalar_select %p190, %s20, 0
      %s192 = sadd.s32 %s191, %s189
      %s193 = smul.addr %s192, 8
      %s194 = scalar_lea.vmem %s2, %s193
      %p195 = pneg %p130
      %p196 = pneg %p127
      %p197 = scmp.lt.s32.totalorder %s19, 1
      %s198 = scalar_select %p197, %s19, 1
      %p199 = scmp.lt.s32.totalorder %s20, 0
      %s200 = scalar_select %p199, %s20, 0
      %s201 = sadd.s32 %s200, %s198
      %s202 = smul.addr %s201, 2
      %s203 = scalar_lea.vmem %s3, %s202
      %s204 = smul.u32 32, %s19
      %p205 = scmp.lt.s32.totalorder %s204, 63
      %s206 = scalar_select %p205, %s204, 63
      %s207 = smul.addr %s206, 8
      %s208 = scalar_lea.vmem %s0, %s207
      %s209 = smul.u32 32, %s19
      %p210 = scmp.lt.s32.totalorder %s20, 0
      %s211 = scalar_select %p210, %s20, 0
      %s212 = smul.addr %s211, 8
      %s213 = scalar_lea.vmem %s1, %s212
      %s214 = smul.u32 32, %s19
      %p215 = scmp.lt.s32.totalorder %s214, 63
      %s216 = scalar_select %p215, %s214, 63
      %p217 = scmp.lt.s32.totalorder %s20, 0
      %s218 = scalar_select %p217, %s20, 0
      %s219 = sadd.s32 %s218, %s216
      %s220 = smul.addr %s219, 8
      %s221 = scalar_lea.vmem %s2, %s220
      %s222 = smul.u32 32, %s19
      %p223 = scmp.lt.s32.totalorder %s19, 1
      %s224 = scalar_select %p223, %s19, 1
      %p225 = scmp.lt.s32.totalorder %s20, 0
      %s226 = scalar_select %p225, %s20, 0
      %s227 = sadd.s32 %s226, %s224
      %s228 = smul.addr %s227, 2
      %s229 = scalar_lea.vmem %s3, %s228
      %v230 = vld [vmem:[%s208] sm:$0xff]
      %v231 = vld [vmem:[%s208 + $0x8] sm:$0xff]
      %v232 = vld [vmem:[%s208 + $0x10] sm:$0xff]
      %v233 = vld [vmem:[%s208 + $0x18] sm:$0xff]
      %v234 = vld [vmem:[%s208 + $0x20] sm:$0xff]
      %v235 = vld [vmem:[%s208 + $0x28] sm:$0xff]
      %v236 = vld [vmem:[%s208 + $0x30] sm:$0xff]
      %v237 = vld [vmem:[%s208 + $0x38] sm:$0xff]
      %v238 = vld [vmem:[%s208 + $0x40] sm:$0xff]
      %v239 = vld [vmem:[%s208 + $0x48] sm:$0xff]
      %v240 = vld [vmem:[%s208 + $0x50] sm:$0xff]
      %v241 = vld [vmem:[%s208 + $0x58] sm:$0xff]
      %v242 = vld [vmem:[%s208 + $0x60] sm:$0xff]
      %v243 = vld [vmem:[%s208 + $0x68] sm:$0xff]
      %v244 = vld [vmem:[%s208 + $0x70] sm:$0xff]
      %v245 = vld [vmem:[%s208 + $0x78] sm:$0xff]
      %v246 = vld [vmem:[%s208 + $0x80] sm:$0xff]
      %v247 = vld [vmem:[%s208 + $0x88] sm:$0xff]
      %v248 = vld [vmem:[%s208 + $0x90] sm:$0xff]
      %v249 = vld [vmem:[%s208 + $0x98] sm:$0xff]
      %v250 = vld [vmem:[%s208 + $0xa0] sm:$0xff]
      %v251 = vld [vmem:[%s208 + $0xa8] sm:$0xff]
      %v252 = vld [vmem:[%s208 + $0xb0] sm:$0xff]
      %v253 = vld [vmem:[%s208 + $0xb8] sm:$0xff]
      %v254 = vld [vmem:[%s208 + $0xc0] sm:$0xff]
      %v255 = vld [vmem:[%s208 + $0xc8] sm:$0xff]
      %v256 = vld [vmem:[%s208 + $0xd0] sm:$0xff]
      %v257 = vld [vmem:[%s208 + $0xd8] sm:$0xff]
      %v258 = vld [vmem:[%s208 + $0xe0] sm:$0xff]
      %v259 = vld [vmem:[%s208 + $0xe8] sm:$0xff]
      %v260 = vld [vmem:[%s208 + $0xf0] sm:$0xff]
      %v261 = vld [vmem:[%s208 + $0xf8] sm:$0xff]
      %v262 = vld [vmem:[%s213] sm:$0xff]
      %v263 = vld [vmem:[%s213 + $0x8] sm:$0xff]
      %v264 = vld [vmem:[%s213 + $0x10] sm:$0xff]
      %v265 = vld [vmem:[%s213 + $0x18] sm:$0xff]
      %v266 = vld [vmem:[%s213 + $0x20] sm:$0xff]
      %vm267 = vcmask 326656
      %v269 = vsel %vm267, %v230, 0
      %v272 = vsel %vm267, %v231, 0
      %v275 = vsel %vm267, %v232, 0
      %v278 = vsel %vm267, %v233, 0
      %v281 = vsel %vm267, %v234, 0
      %v284 = vsel %vm267, %v235, 0
      %v287 = vsel %vm267, %v236, 0
      %v290 = vsel %vm267, %v237, 0
      %v293 = vsel %vm267, %v238, 0
      %v296 = vsel %vm267, %v239, 0
      %v299 = vsel %vm267, %v240, 0
      %v302 = vsel %vm267, %v241, 0
      %v305 = vsel %vm267, %v242, 0
      %v308 = vsel %vm267, %v243, 0
      %v311 = vsel %vm267, %v244, 0
      %v314 = vsel %vm267, %v245, 0
      %v317 = vsel %vm267, %v246, 0
      %v320 = vsel %vm267, %v247, 0
      %v323 = vsel %vm267, %v248, 0
      %v326 = vsel %vm267, %v249, 0
      %v329 = vsel %vm267, %v250, 0
      %v332 = vsel %vm267, %v251, 0
      %v335 = vsel %vm267, %v252, 0
      %v338 = vsel %vm267, %v253, 0
      %v341 = vsel %vm267, %v254, 0
      %v344 = vsel %vm267, %v255, 0
      %v347 = vsel %vm267, %v256, 0
      %v350 = vsel %vm267, %v257, 0
      %v353 = vsel %vm267, %v258, 0
      %v356 = vsel %vm267, %v259, 0
      %v359 = vsel %vm267, %v260, 0
      %v362 = vsel %vm267, %v261, 0
      %364 = vmatprep.subr.mxu0 0.0
      %365 = vmatpush1.msra.mxu0 0.0
      %366 = vmatprep.subr.mxu0 0.0
      %367 = vmatpush1.msra.mxu0 0.0
      %368 = vmatprep.subr.mxu0 0.0
      %369 = vmatpush1.msra.mxu0 0.0
      %370 = vmatprep.subr.mxu0 0.0
      %371 = vmatpush1.msra.mxu0 0.0
      %372 = vmatprep.subr.mxu0 0.0
      %373 = vmatpush1.msra.mxu0 0.0
      %374 = vmatprep.subr.mxu0 0.0
      %375 = vmatpush1.msra.mxu0 0.0
      %376 = vmatprep.subr.mxu0 0.0
      %377 = vmatpush1.msra.mxu0 0.0
      %378 = vmatprep.subr.mxu0 0.0
      %379 = vmatpush1.msra.mxu0 0.0
      %380 = vmatprep.subr.mxu0 0.0
      %381 = vmatpush1.msra.mxu0 0.0
      %382 = vmatprep.subr.mxu0 0.0
      %383 = vmatpush1.msra.mxu0 0.0
      %384 = vmatprep.subr.mxu0 0.0
      %385 = vmatpush1.msra.mxu0 0.0
      %386 = vmatprep.subr.mxu0 0.0
      %387 = vmatpush1.msra.mxu0 %v266
      %388 = vmatprep.subr.mxu0 0.0
      %389 = vmatpush1.msra.mxu0 %v265
      %390 = vmatprep.subr.mxu0 0.0
      %391 = vmatpush1.msra.mxu0 %v264
      %392 = vmatprep.subr.mxu0 0.0
      %393 = vmatpush1.msra.mxu0 %v263
      %394 = vmatprep.subr.mxu0 0.0
      %395 = vmatpush1.msra.mxu0 %v262
      %396 = vmatprep.subr.mxu0 0.0
      %397 = vmatpush2.msra.mxu0 0.0
      %398 = vmatprep.subr.mxu0 0.0
      %399 = vmatpush2.msra.mxu0 0.0
      %400 = vmatprep.subr.mxu0 0.0
      %401 = vmatpush2.msra.mxu0 0.0
      %402 = vmatprep.subr.mxu0 0.0
      %403 = vmatpush2.msra.mxu0 0.0
      %404 = vmatprep.subr.mxu0 0.0
      %405 = vmatpush2.msra.mxu0 0.0
      %406 = vmatprep.subr.mxu0 0.0
      %407 = vmatpush2.msra.mxu0 0.0
      %408 = vmatprep.subr.mxu0 0.0
      %409 = vmatpush2.msra.mxu0 0.0
      %410 = vmatprep.subr.mxu0 0.0
      %411 = vmatpush2.msra.mxu0 0.0
      %412 = vmatprep.subr.mxu0 0.0
      %413 = vmatpush2.msra.mxu0 0.0
      %414 = vmatprep.subr.mxu0 0.0
      %415 = vmatpush2.msra.mxu0 0.0
      %416 = vmatprep.subr.mxu0 0.0
      %417 = vmatpush2.msra.mxu0 0.0
      %418 = vmatprep.subr.mxu0 0.0
      %419 = vmatpush2.msra.mxu0 0.0
      %420 = vmatprep.subr.mxu0 0.0
      %421 = vmatpush2.msra.mxu0 0.0
      %422 = vmatprep.subr.mxu0 0.0
      %423 = vmatpush2.msra.mxu0 0.0
      %424 = vmatprep.subr.mxu0 0.0
      %425 = vmatpush2.msra.mxu0 0.0
      %426 = vmatprep.subr.mxu0 0.0
      %427 = vmatpush2.msra.mxu0 0.0
      %428 = vmatprep.mubr.f32.mxu0 0.0
      %429 = vmatmul.mubr.f32.gmra.mxu0 %v269
      %v430 = vpop.f32.mrf.mxu0
      %v431 = vadd.f32 0.0, %v430
      %v432 = vpop.f32.mrf.mxu0
      %433 = vmatprep.mubr.f32.mxu0 0.0
      %434 = vmatmul.mubr.f32.gmra.mxu0 %v272
      %v435 = vpop.f32.mrf.mxu0
      %v436 = vadd.f32 0.0, %v435
      %v437 = vpop.f32.mrf.mxu0
      %438 = vmatprep.mubr.f32.mxu0 0.0
      %439 = vmatmul.mubr.f32.gmra.mxu0 %v275
      %v440 = vpop.f32.mrf.mxu0
      %v441 = vadd.f32 0.0, %v440
      %v442 = vpop.f32.mrf.mxu0
      %443 = vmatprep.mubr.f32.mxu0 0.0
      %444 = vmatmul.mubr.f32.gmra.mxu0 %v278
      %v445 = vpop.f32.mrf.mxu0
      %v446 = vadd.f32 0.0, %v445
      %v447 = vpop.f32.mrf.mxu0
      %448 = vmatprep.mubr.f32.mxu0 0.0
      %449 = vmatmul.mubr.f32.gmra.mxu0 %v281
      %v450 = vpop.f32.mrf.mxu0
      %v451 = vadd.f32 0.0, %v450
      %v452 = vpop.f32.mrf.mxu0
      %453 = vmatprep.mubr.f32.mxu0 0.0
      %454 = vmatmul.mubr.f32.gmra.mxu0 %v284
      %v455 = vpop.f32.mrf.mxu0
      %v456 = vadd.f32 0.0, %v455
      %v457 = vpop.f32.mrf.mxu0
      %458 = vmatprep.mubr.f32.mxu0 0.0
      %459 = vmatmul.mubr.f32.gmra.mxu0 %v287
      %v460 = vpop.f32.mrf.mxu0
      %v461 = vadd.f32 0.0, %v460
      %v462 = vpop.f32.mrf.mxu0
      %463 = vmatprep.mubr.f32.mxu0 0.0
      %464 = vmatmul.mubr.f32.gmra.mxu0 %v290
      %v465 = vpop.f32.mrf.mxu0
      %v466 = vadd.f32 0.0, %v465
      %v467 = vpop.f32.mrf.mxu0
      %468 = vmatprep.mubr.f32.mxu0 0.0
      %469 = vmatmul.mubr.f32.gmra.mxu0 %v293
      %v470 = vpop.f32.mrf.mxu0
      %v471 = vadd.f32 0.0, %v470
      %v472 = vpop.f32.mrf.mxu0
      %473 = vmatprep.mubr.f32.mxu0 0.0
      %474 = vmatmul.mubr.f32.gmra.mxu0 %v296
      %v475 = vpop.f32.mrf.mxu0
      %v476 = vadd.f32 0.0, %v475
      %v477 = vpop.f32.mrf.mxu0
      %478 = vmatprep.mubr.f32.mxu0 0.0
      %479 = vmatmul.mubr.f32.gmra.mxu0 %v299
      %v480 = vpop.f32.mrf.mxu0
      %v481 = vadd.f32 0.0, %v480
      %v482 = vpop.f32.mrf.mxu0
      %483 = vmatprep.mubr.f32.mxu0 0.0
      %484 = vmatmul.mubr.f32.gmra.mxu0 %v302
      %v485 = vpop.f32.mrf.mxu0
      %v486 = vadd.f32 0.0, %v485
      %v487 = vpop.f32.mrf.mxu0
      %488 = vmatprep.mubr.f32.mxu0 0.0
      %489 = vmatmul.mubr.f32.gmra.mxu0 %v305
      %v490 = vpop.f32.mrf.mxu0
      %v491 = vadd.f32 0.0, %v490
      %v492 = vpop.f32.mrf.mxu0
      %493 = vmatprep.mubr.f32.mxu0 0.0
      %494 = vmatmul.mubr.f32.gmra.mxu0 %v308
      %v495 = vpop.f32.mrf.mxu0
      %v496 = vadd.f32 0.0, %v495
      %v497 = vpop.f32.mrf.mxu0
      %498 = vmatprep.mubr.f32.mxu0 0.0
      %499 = vmatmul.mubr.f32.gmra.mxu0 %v311
      %v500 = vpop.f32.mrf.mxu0
      %v501 = vadd.f32 0.0, %v500
      %v502 = vpop.f32.mrf.mxu0
      %503 = vmatprep.mubr.f32.mxu0 0.0
      %504 = vmatmul.mubr.f32.gmra.mxu0 %v314
      %v505 = vpop.f32.mrf.mxu0
      %v506 = vadd.f32 0.0, %v505
      %v507 = vpop.f32.mrf.mxu0
      %508 = vmatprep.mubr.f32.mxu0 0.0
      %509 = vmatmul.mubr.f32.gmra.mxu0 %v317
      %v510 = vpop.f32.mrf.mxu0
      %v511 = vadd.f32 0.0, %v510
      %v512 = vpop.f32.mrf.mxu0
      %513 = vmatprep.mubr.f32.mxu0 0.0
      %514 = vmatmul.mubr.f32.gmra.mxu0 %v320
      %v515 = vpop.f32.mrf.mxu0
      %v516 = vadd.f32 0.0, %v515
      %v517 = vpop.f32.mrf.mxu0
      %518 = vmatprep.mubr.f32.mxu0 0.0
      %519 = vmatmul.mubr.f32.gmra.mxu0 %v323
      %v520 = vpop.f32.mrf.mxu0
      %v521 = vadd.f32 0.0, %v520
      %v522 = vpop.f32.mrf.mxu0
      %523 = vmatprep.mubr.f32.mxu0 0.0
      %524 = vmatmul.mubr.f32.gmra.mxu0 %v326
      %v525 = vpop.f32.mrf.mxu0
      %v526 = vadd.f32 0.0, %v525
      %v527 = vpop.f32.mrf.mxu0
      %528 = vmatprep.mubr.f32.mxu0 0.0
      %529 = vmatmul.mubr.f32.gmra.mxu0 %v329
      %v530 = vpop.f32.mrf.mxu0
      %v531 = vadd.f32 0.0, %v530
      %v532 = vpop.f32.mrf.mxu0
      %533 = vmatprep.mubr.f32.mxu0 0.0
      %534 = vmatmul.mubr.f32.gmra.mxu0 %v332
      %v535 = vpop.f32.mrf.mxu0
      %v536 = vadd.f32 0.0, %v535
      %v537 = vpop.f32.mrf.mxu0
      %538 = vmatprep.mubr.f32.mxu0 0.0
      %539 = vmatmul.mubr.f32.gmra.mxu0 %v335
      %v540 = vpop.f32.mrf.mxu0
      %v541 = vadd.f32 0.0, %v540
      %v542 = vpop.f32.mrf.mxu0
      %543 = vmatprep.mubr.f32.mxu0 0.0
      %544 = vmatmul.mubr.f32.gmra.mxu0 %v338
      %v545 = vpop.f32.mrf.mxu0
      %v546 = vadd.f32 0.0, %v545
      %v547 = vpop.f32.mrf.mxu0
      %548 = vmatprep.mubr.f32.mxu0 0.0
      %549 = vmatmul.mubr.f32.gmra.mxu0 %v341
      %v550 = vpop.f32.mrf.mxu0
      %v551 = vadd.f32 0.0, %v550
      %v552 = vpop.f32.mrf.mxu0
      %553 = vmatprep.mubr.f32.mxu0 0.0
      %554 = vmatmul.mubr.f32.gmra.mxu0 %v344
      %v555 = vpop.f32.mrf.mxu0
      %v556 = vadd.f32 0.0, %v555
      %v557 = vpop.f32.mrf.mxu0
      %558 = vmatprep.mubr.f32.mxu0 0.0
      %559 = vmatmul.mubr.f32.gmra.mxu0 %v347
      %v560 = vpop.f32.mrf.mxu0
      %v561 = vadd.f32 0.0, %v560
      %v562 = vpop.f32.mrf.mxu0
      %563 = vmatprep.mubr.f32.mxu0 0.0
      %564 = vmatmul.mubr.f32.gmra.mxu0 %v350
      %v565 = vpop.f32.mrf.mxu0
      %v566 = vadd.f32 0.0, %v565
      %v567 = vpop.f32.mrf.mxu0
      %568 = vmatprep.mubr.f32.mxu0 0.0
      %569 = vmatmul.mubr.f32.gmra.mxu0 %v353
      %v570 = vpop.f32.mrf.mxu0
      %v571 = vadd.f32 0.0, %v570
      %v572 = vpop.f32.mrf.mxu0
      %573 = vmatprep.mubr.f32.mxu0 0.0
      %574 = vmatmul.mubr.f32.gmra.mxu0 %v356
      %v575 = vpop.f32.mrf.mxu0
      %v576 = vadd.f32 0.0, %v575
      %v577 = vpop.f32.mrf.mxu0
      %578 = vmatprep.mubr.f32.mxu0 0.0
      %579 = vmatmul.mubr.f32.gmra.mxu0 %v359
      %v580 = vpop.f32.mrf.mxu0
      %v581 = vadd.f32 0.0, %v580
      %v582 = vpop.f32.mrf.mxu0
      %583 = vmatprep.mubr.f32.mxu0 0.0
      %584 = vmatmul.mubr.f32.gmra.mxu0 %v362
      %v585 = vpop.f32.mrf.mxu0
      %v586 = vadd.f32 0.0, %v585
      %v587 = vpop.f32.mrf.mxu0
      %588 = vdwg.mxu0
      %589 = vst [vmem:[%s221] sm:$0xff] %v431
      %590 = vst [vmem:[%s221 + $0x8] sm:$0xff] %v436
      %591 = vst [vmem:[%s221 + $0x10] sm:$0xff] %v441
      %592 = vst [vmem:[%s221 + $0x18] sm:$0xff] %v446
      %593 = vst [vmem:[%s221 + $0x20] sm:$0xff] %v451
      %594 = vst [vmem:[%s221 + $0x28] sm:$0xff] %v456
      %595 = vst [vmem:[%s221 + $0x30] sm:$0xff] %v461
      %596 = vst [vmem:[%s221 + $0x38] sm:$0xff] %v466
      %597 = vst [vmem:[%s221 + $0x40] sm:$0xff] %v471
      %598 = vst [vmem:[%s221 + $0x48] sm:$0xff] %v476
      %599 = vst [vmem:[%s221 + $0x50] sm:$0xff] %v481
      %600 = vst [vmem:[%s221 + $0x58] sm:$0xff] %v486
      %601 = vst [vmem:[%s221 + $0x60] sm:$0xff] %v491
      %602 = vst [vmem:[%s221 + $0x68] sm:$0xff] %v496
      %603 = vst [vmem:[%s221 + $0x70] sm:$0xff] %v501
      %604 = vst [vmem:[%s221 + $0x78] sm:$0xff] %v506
      %605 = vst [vmem:[%s221 + $0x80] sm:$0xff] %v511
      %606 = vst [vmem:[%s221 + $0x88] sm:$0xff] %v516
      %607 = vst [vmem:[%s221 + $0x90] sm:$0xff] %v521
      %608 = vst [vmem:[%s221 + $0x98] sm:$0xff] %v526
      %609 = vst [vmem:[%s221 + $0xa0] sm:$0xff] %v531
      %610 = vst [vmem:[%s221 + $0xa8] sm:$0xff] %v536
      %611 = vst [vmem:[%s221 + $0xb0] sm:$0xff] %v541
      %612 = vst [vmem:[%s221 + $0xb8] sm:$0xff] %v546
      %613 = vst [vmem:[%s221 + $0xc0] sm:$0xff] %v551
      %614 = vst [vmem:[%s221 + $0xc8] sm:$0xff] %v556
      %615 = vst [vmem:[%s221 + $0xd0] sm:$0xff] %v561
      %616 = vst [vmem:[%s221 + $0xd8] sm:$0xff] %v566
      %617 = vst [vmem:[%s221 + $0xe0] sm:$0xff] %v571
      %618 = vst [vmem:[%s221 + $0xe8] sm:$0xff] %v576
      %619 = vst [vmem:[%s221 + $0xf0] sm:$0xff] %v581
      %620 = vst [vmem:[%s221 + $0xf8] sm:$0xff] %v586
      %v621 = vadd.f32 %v431, %v436
      %v622 = vadd.f32 %v621, %v441
      %v623 = vadd.f32 %v622, %v446
      %v624 = vadd.f32 %v623, %v451
      %v625 = vadd.f32 %v624, %v456
      %v626 = vadd.f32 %v625, %v461
      %v627 = vadd.f32 %v626, %v466
      %v628 = vadd.f32 %v627, %v471
      %v629 = vadd.f32 %v628, %v476
      %v630 = vadd.f32 %v629, %v481
      %v631 = vadd.f32 %v630, %v486
      %v632 = vadd.f32 %v631, %v491
      %v633 = vadd.f32 %v632, %v496
      %v634 = vadd.f32 %v633, %v501
      %v635 = vadd.f32 %v634, %v506
      %v636 = vadd.f32 %v635, %v511
      %v637 = vadd.f32 %v636, %v516
      %v638 = vadd.f32 %v637, %v521
      %v639 = vadd.f32 %v638, %v526
      %v640 = vadd.f32 %v639, %v531
      %v641 = vadd.f32 %v640, %v536
      %v642 = vadd.f32 %v641, %v541
      %v643 = vadd.f32 %v642, %v546
      %v644 = vadd.f32 %v643, %v551
      %v645 = vadd.f32 %v644, %v556
      %v646 = vadd.f32 %v645, %v561
      %v647 = vadd.f32 %v646, %v566
      %v648 = vadd.f32 %v647, %v571
      %v649 = vadd.f32 %v648, %v576
      %v650 = vadd.f32 %v649, %v581
      %v651 = vadd.f32 %v650, %v586
      %v652 = vrot.slane %v651, 4
      %v653 = vadd.f32 %v651, %v652
      %v654 = vrot.slane %v653, 2
      %v655 = vadd.f32 %v653, %v654
      %v656 = vrot.slane %v655, 1
      %v657 = vadd.f32 %v655, %v656
      %v658 = vmul.f32 %v431, %v431
      %v659 = vmul.f32 %v436, %v436
      %v660 = vmul.f32 %v441, %v441
      %v661 = vmul.f32 %v446, %v446
      %v662 = vmul.f32 %v451, %v451
      %v663 = vmul.f32 %v456, %v456
      %v664 = vmul.f32 %v461, %v461
      %v665 = vmul.f32 %v466, %v466
      %v666 = vmul.f32 %v471, %v471
      %v667 = vmul.f32 %v476, %v476
      %v668 = vmul.f32 %v481, %v481
      %v669 = vmul.f32 %v486, %v486
      %v670 = vmul.f32 %v491, %v491
      %v671 = vmul.f32 %v496, %v496
      %v672 = vmul.f32 %v501, %v501
      %v673 = vmul.f32 %v506, %v506
      %v674 = vmul.f32 %v511, %v511
      %v675 = vmul.f32 %v516, %v516
      %v676 = vmul.f32 %v521, %v521
      %v677 = vmul.f32 %v526, %v526
      %v678 = vmul.f32 %v531, %v531
      %v679 = vmul.f32 %v536, %v536
      %v680 = vmul.f32 %v541, %v541
      %v681 = vmul.f32 %v546, %v546
      %v682 = vmul.f32 %v551, %v551
      %v683 = vmul.f32 %v556, %v556
      %v684 = vmul.f32 %v561, %v561
      %v685 = vmul.f32 %v566, %v566
      %v686 = vmul.f32 %v571, %v571
      %v687 = vmul.f32 %v576, %v576
      %v688 = vmul.f32 %v581, %v581
      %v689 = vmul.f32 %v586, %v586
      %v690 = vadd.f32 %v658, %v659
      %v691 = vadd.f32 %v690, %v660
      %v692 = vadd.f32 %v691, %v661
      %v693 = vadd.f32 %v692, %v662
      %v694 = vadd.f32 %v693, %v663
      %v695 = vadd.f32 %v694, %v664
      %v696 = vadd.f32 %v695, %v665
      %v697 = vadd.f32 %v696, %v666
      %v698 = vadd.f32 %v697, %v667
      %v699 = vadd.f32 %v698, %v668
      %v700 = vadd.f32 %v699, %v669
      %v701 = vadd.f32 %v700, %v670
      %v702 = vadd.f32 %v701, %v671
      %v703 = vadd.f32 %v702, %v672
      %v704 = vadd.f32 %v703, %v673
      %v705 = vadd.f32 %v704, %v674
      %v706 = vadd.f32 %v705, %v675
      %v707 = vadd.f32 %v706, %v676
      %v708 = vadd.f32 %v707, %v677
      %v709 = vadd.f32 %v708, %v678
      %v710 = vadd.f32 %v709, %v679
      %v711 = vadd.f32 %v710, %v680
      %v712 = vadd.f32 %v711, %v681
      %v713 = vadd.f32 %v712, %v682
      %v714 = vadd.f32 %v713, %v683
      %v715 = vadd.f32 %v714, %v684
      %v716 = vadd.f32 %v715, %v685
      %v717 = vadd.f32 %v716, %v686
      %v718 = vadd.f32 %v717, %v687
      %v719 = vadd.f32 %v718, %v688
      %v720 = vadd.f32 %v719, %v689
      %v721 = vrot.slane %v720, 4
      %v722 = vadd.f32 %v720, %v721
      %v723 = vrot.slane %v722, 2
      %v724 = vadd.f32 %v722, %v723
      %v725 = vrot.slane %v724, 1
      %v726 = vadd.f32 %v724, %v725
      %vm727 = vcmask 1040384
      %v728 = vsel %vm727, %v657, %v726
      %729 = vst [vmem:[%s229] sm:$0x3] %v728
      %s730 = smul.u32 32, %s19
      %p731 = scmp.lt.s32.totalorder %s730, 63
      %s732 = scalar_select %p731, %s730, 63
      %p733 = scmp.lt.s32.totalorder %s20, 0
      %s734 = scalar_select %p733, %s20, 0
      %s735 = sadd.s32 %s734, %s732
      %s736 = smul.addr %s735, 8
      %s737 = scalar_lea.vmem %s2, %s736
      %p738 = scmp.lt.s32.totalorder %s19, 1
      %s739 = scalar_select %p738, %s19, 1
      %p740 = scmp.lt.s32.totalorder %s20, 0
      %s741 = scalar_select %p740, %s20, 0
      %s742 = sadd.s32 %s741, %s739
      %s743 = smul.addr %s742, 2
      %s744 = scalar_lea.vmem %s3, %s743
      // Predicated region
      $region29: #{conv_norm_layer.2} parent=27 // pred_check
        %p745 = pneg %p99
      $region30: #{conv_norm_layer.2} parent=27 // pred_check_branch
        %747 = sbr.rel (%p745) target = $region32
      $region31: #{conv_norm_layer.2} parent=27 // pred_region
        %s748 = smul.u32 32, %s19
      $region32: #{conv_norm_layer.2} parent=27 // pred_fallthru
        _
      // Predicated region
      $region33: #{conv_norm_layer.2} parent=27 // pred_check
        %p749 = pneg %p127
      $region34: #{conv_norm_layer.2} parent=27 // pred_check_branch
        %751 = sbr.rel (%p749) target = $region36
      $region35: #{conv_norm_layer.2} parent=27 // pred_region
        _
      $region36: #{conv_norm_layer.2} parent=27 // pred_fallthru
        _
    $region28: #{conv_norm_layer.2} parent=5 // pred_fallthru
      _
    %p752 = scmp.le.s32.totalorder 2, %s10
    // Predicated region
    $region37: #{conv_norm_layer.2} parent=5 // pred_check
      %p753 = pneg %p752
    $region38: #{conv_norm_layer.2} parent=5 // pred_check_branch
      %755 = sbr.rel (%p753) target = $region40
    $region39: #{conv_norm_layer.2} parent=5 // pred_region
      %s756 = ssub.s32 %s10, 2
      // Predicated region
      $region41: #{conv_norm_layer.2} parent=39 // pred_check
        %p757 = pneg %p105
      $region42: #{conv_norm_layer.2} parent=39 // pred_check_branch
        %759 = sbr.rel (%p757) target = $region44
      $region43: #{conv_norm_layer.2} parent=39 // pred_region
        %s760 = smul.u32 32, %s21
        %p761 = scmp.lt.s32.totalorder %s760, 63
        %s762 = scalar_select %p761, %s760, 63
        %p763 = scmp.lt.s32.totalorder %s22, 0
        %s764 = scalar_select %p763, %s22, 0
        %s765 = sadd.s32 %s764, %s762
        %s766 = smul.addr %s765, 8
        %s767 = scalar_lea.vmem %s2, %s766
      $region44: #{conv_norm_layer.2} parent=39 // pred_fallthru
        _
      // Predicated region
      $region45: #{conv_norm_layer.2} parent=39 // pred_check
        %p768 = pneg %p133
      $region46: #{conv_norm_layer.2} parent=39 // pred_check_branch
        %770 = sbr.rel (%p768) target = $region48
      $region47: #{conv_norm_layer.2} parent=39 // pred_region
        %p771 = scmp.lt.s32.totalorder %s21, 1
        %s772 = scalar_select %p771, %s21, 1
        %p773 = scmp.lt.s32.totalorder %s22, 0
        %s774 = scalar_select %p773, %s22, 0
        %s775 = sadd.s32 %s774, %s772
        %s776 = smul.addr %s775, 2
        %s777 = scalar_lea.vmem %s3, %s776
      $region48: #{conv_norm_layer.2} parent=39 // pred_fallthru
        _
    $region40: #{conv_norm_layer.2} parent=5 // pred_fallthru
      _
  $region6: #{conv_norm_layer.2} parent=0 // loop_footer
    %s14 = sadd.s32 1, %s10
  $region7: #{conv_norm_layer.2} parent=0 // loop_footer_branch
    %9 = sbr.rel target = $region3
  $region8: #{conv_norm_layer.2} parent=0 // loop_exit
    _

</llo_original>
